<compile_context>
chip_gen: v7x
topology: tpu7x:2x2x1
jax: 0.10.0
libtpu: 0.0.40
codegen_flags: <defaults>
</compile_context>

<pallas_src>
import math
from math import sqrt

import jax
import jax.numpy as jnp
from jax.experimental import pallas as pl
from jax.experimental.pallas import tpu as pltpu

LANE = 1024            # flat-slab width; large multiple of 128 -> unmasked stores
_TILE_ROWS = 512       # 512x1024 f32 = 2 MiB per buffer
_PALLAS_MIN_ELEMS = 8192   # below this, launch overhead dominates; use plain XLA


def equalized_weight_scale(shape) -> float:
    """The equalized-LR scale c = 1/sqrt(fan_in); fold into the consumer when possible."""
    fan_in = math.prod(shape[1:]) if len(shape) > 1 else 1
    return 1.0 / sqrt(float(fan_in))


def _make_scale_kernel(c: float):
    def kernel(w_ref, o_ref):
        # Elementwise equalized-LR scaling on the VPU; multiply in f32 for
        # precision parity with PyTorch (exact for f32 weights).
        w = w_ref[...].astype(jnp.float32)
        o_ref[...] = (w * jnp.float32(c)).astype(o_ref.dtype)
    return kernel


def equalized_weight_forward(weight: jax.Array) -> jax.Array:
    """Returns weight * (1 / sqrt(prod(shape[1:]))), matching EqualizedWeight.forward()."""
    shape = weight.shape
    c = equalized_weight_scale(shape)
    n = math.prod(shape) if len(shape) > 0 else 1

    # Tiny parameters: a kernel launch is 100% overhead -> let XLA fuse it.
    if n < _PALLAS_MIN_ELEMS:
        return (weight.astype(jnp.float32) * jnp.float32(c)).astype(weight.dtype)

    # Flatten the whole tensor to a lane-dense (rows, LANE) slab; pad the tail
    # in plain JAX if the element count is not a multiple of LANE.
    flat = weight.reshape(-1)
    pad = (-n) % LANE
    if pad:
        flat = jnp.pad(flat, (0, pad))
    rows = flat.shape[0] // LANE
    w2d = flat.reshape(rows, LANE)

    if rows <= _TILE_ROWS:
        # Full-extent block (exempt from the (8,128) divisibility rule), grid = 1.
        tile_rows = rows
    else:
        # 512 % 8 == 0 and LANE % 128 == 0 -> legal tile; Pallas handles the
        # ragged final block (padded reads, masked writes).
        tile_rows = _TILE_ROWS

    grid = (pl.cdiv(rows, tile_rows),)

    out2d = pl.pallas_call(
        _make_scale_kernel(c),
        out_shape=jax.ShapeDtypeStruct((rows, LANE), weight.dtype),
        grid=grid,
        in_specs=[pl.BlockSpec((tile_rows, LANE), lambda i: (i, 0))],
        out_specs=pl.BlockSpec((tile_rows, LANE), lambda i: (i, 0)),
        compiler_params=pltpu.CompilerParams(
            # "parallel": shard rows across both TensorCores on v7x.
            dimension_semantics=("parallel",),
        ),
    )(w2d)

    out_flat = out2d.reshape(-1)
    if pad:
        out_flat = out_flat[:n]
    return out_flat.reshape(shape)


if __name__ == "__main__":
    key = jax.random.PRNGKey(0)
    k1, k2 = jax.random.split(key)

    # Case 1: tiny StyleGAN-style conv weight -> plain-XLA fast path (no launch overhead).
    w_small = jax.random.normal(k1, (8, 4, 3, 3), dtype=jnp.float32)
    out_small = jax.block_until_ready(equalized_weight_forward(w_small))
    ref_small = w_small * (1.0 / sqrt(4 * 3 * 3))
    assert out_small.shape == w_small.shape and out_small.dtype == w_small.dtype
    assert jnp.allclose(out_small, ref_small, atol=1e-6, rtol=1e-6)

    # Case 2: moderate conv weight -> Pallas kernel, single full-extent lane-dense block.
    w_mid = jax.random.normal(k2, (128, 64, 3, 3), dtype=jnp.float32)
    out_mid = jax.block_until_ready(equalized_weight_forward(w_mid))
    ref_mid = w_mid * (1.0 / sqrt(64 * 3 * 3))
    assert out_mid.shape == w_mid.shape and out_mid.dtype == w_mid.dtype
    assert jnp.allclose(out_mid, ref_mid, atol=1e-6, rtol=1e-6)

    # Case 3: larger conv weight -> multi-step parallel grid with a ragged last tile
    # (576 rows of 1024 lanes, tiled at 512).
    w_big = jax.random.normal(key, (512, 128, 3, 3), dtype=jnp.float32)
    out_big = jax.block_until_ready(equalized_weight_forward(w_big))
    ref_big = w_big * (1.0 / sqrt(128 * 3 * 3))
    assert out_big.shape == w_big.shape and out_big.dtype == w_big.dtype
    assert jnp.allclose(out_big, ref_big, atol=1e-6, rtol=1e-6)

    print("KERNEL_OK")
</pallas_src>

<mosaic_0001>
module attributes {stable_mosaic.version = 11 : i64} {
  func.func @kernel(%arg0: i32, %arg1: memref<72x1024xf32, #tpu.memory_space<vmem>>, %arg2: memref<72x1024xf32, #tpu.memory_space<vmem>>) attributes {dimension_semantics = [#tpu.dimension_semantics<parallel>], iteration_bounds = array<i64: 1>, scalar_prefetch = 0 : i64, scratch_operands = 0 : i64, tpu.core_type = #tpu.core_type<tc>, window_params = [{transform_indices = @transform_0, window_bounds = array<i64: 72, 1024>}, {transform_indices = @transform_1, window_bounds = array<i64: 72, 1024>}]} {
    %c0 = arith.constant 0 : index
    %c0_0 = arith.constant 0 : index
    %0 = vector.load %arg1[%c0, %c0_0] : memref<72x1024xf32, #tpu.memory_space<vmem>>, vector<72x1024xf32>
    %cst = arith.constant 0.0416666679 : f32
    %1 = vector.broadcast %cst : f32 to vector<72x1024xf32>
    %2 = arith.mulf %0, %1 : vector<72x1024xf32>
    %c0_1 = arith.constant 0 : index
    %c0_2 = arith.constant 0 : index
    %3 = vector.load %arg2[%c0_1, %c0_2] : memref<72x1024xf32, #tpu.memory_space<vmem>>, vector<72x1024xf32>
    tpu.vector_store %arg2[%c0_1, %c0_2], %2 {strides = array<i32>} : memref<72x1024xf32, #tpu.memory_space<vmem>>, vector<72x1024xf32>,
    return
  }
  func.func @transform_0(%arg0: i32) -> (i32, i32) {
    %c0_i32 = arith.constant 0 : i32
    %c0_i32_0 = arith.constant 0 : i32
    return %arg0, %c0_i32 : i32, i32
  }
  func.func @transform_1(%arg0: i32) -> (i32, i32) {
    %c0_i32 = arith.constant 0 : i32
    %c0_i32_0 = arith.constant 0 : i32
    return %arg0, %c0_i32 : i32, i32
  }
}

</mosaic_0001>

<llo_original>
// kernel: tpu_custom_call.1
$region0: #{tpu_custom_call.1}
  #allocation0 [shape = 'u32[]', space=smem, size = 0x4, offset = 0x4, fixed_abs, tag = 'smem constant byte address 0x4 - core index']
  #allocation1 [shape = 'u32[144,128]{1,0:T(1,128)}', space=vmem, size = 0x12000, scoped, tag = 'internal scratch']
  %s0 = inlined_call_operand.hbm [shape: f32[72,1024], index: 0, kind: input, shape index: {}]
  %s1 = inlined_call_operand.hbm [shape: f32[72,1024], index: 1, kind: output, shape index: {}]
  %s2 = sld [smem:[#allocation0]]
  $region18: #{tpu_custom_call.1} parent=0
    _
  %s4 = ssub.s32 1, %s2
  %s5 = scalar_select 0, %s4, %s2
  $region1: #{tpu_custom_call.1} parent=0
    #allocation2 [shape = 'u8[294912]{0}', space=vmem, size = 0x48000, scoped, tag = 'input window, operand 0, single buffered']
    #allocation3 [shape = 's32[1]{0}', space=sflag, size = 0x4, scoped, tag = 'scoped memory for tpu_custom_call.1']
    #allocation4 [shape = 's32[1]{0}', space=sflag, size = 0x4, scoped, tag = 'scoped memory for tpu_custom_call.1']
    #allocation5 [shape = 'u8[294912]{0}', space=vmem, size = 0x48000, scoped, tag = 'output window, operand 0, single buffered']
    %6 = vsyncpa [#allocation3], 0
    %7 = vsyncpa [#allocation4], 0
    // Predicated region
    $region2: #{tpu_custom_call.1} parent=1 // pred_check
      _
    $region3: #{tpu_custom_call.1} parent=1 // pred_check_branch
      %9 = sbr.rel (0) target = $region5
    $region4: #{tpu_custom_call.1} parent=1 // pred_region
      %s11 = ssub.s32 9216, 9216
      %12 = vsyncadd [#allocation3], %s11
      %s13 = sshll.u32 [#allocation2], 4
      %s14 = int_to_ptr.vmem [resolvable:$true] %s13
      %19 = dma.hbm_to_vmem [thread:$0]  %s0, 9216, %s14, [#allocation3], 1024, 1024, 64
    $region5: #{tpu_custom_call.1} parent=1 // pred_fallthru
      _
    // Predicated region
    $region6: #{tpu_custom_call.1} parent=1 // pred_check
      _
    $region7: #{tpu_custom_call.1} parent=1 // pred_check_branch
      %21 = sbr.rel (0) target = $region9
    $region8: #{tpu_custom_call.1} parent=1 // pred_region
      %22 = dma.done [#allocation3], 9216
    $region9: #{tpu_custom_call.1} parent=1 // pred_fallthru
      _
    %v23 = vld [vmem:[#allocation2] sm:$0xff]
    %v24 = vld [vmem:[#allocation2 + $0x8] sm:$0xff]
    %v25 = vld [vmem:[#allocation2 + $0x10] sm:$0xff]
    %v26 = vld [vmem:[#allocation2 + $0x18] sm:$0xff]
    %v27 = vld [vmem:[#allocation2 + $0x20] sm:$0xff]
    %v28 = vld [vmem:[#allocation2 + $0x28] sm:$0xff]
    %v29 = vld [vmem:[#allocation2 + $0x30] sm:$0xff]
    %v30 = vld [vmem:[#allocation2 + $0x38] sm:$0xff]
    %v31 = vld [vmem:[#allocation2 + $0x40] sm:$0xff]
    %v32 = vld [vmem:[#allocation2 + $0x48] sm:$0xff]
    %v33 = vld [vmem:[#allocation2 + $0x50] sm:$0xff]
    %v34 = vld [vmem:[#allocation2 + $0x58] sm:$0xff]
    %v35 = vld [vmem:[#allocation2 + $0x60] sm:$0xff]
    %v36 = vld [vmem:[#allocation2 + $0x68] sm:$0xff]
    %v37 = vld [vmem:[#allocation2 + $0x70] sm:$0xff]
    %v38 = vld [vmem:[#allocation2 + $0x78] sm:$0xff]
    %v39 = vld [vmem:[#allocation2 + $0x80] sm:$0xff]
    %v40 = vld [vmem:[#allocation2 + $0x88] sm:$0xff]
    %v41 = vld [vmem:[#allocation2 + $0x90] sm:$0xff]
    %v42 = vld [vmem:[#allocation2 + $0x98] sm:$0xff]
    %v43 = vld [vmem:[#allocation2 + $0xa0] sm:$0xff]
    %v44 = vld [vmem:[#allocation2 + $0xa8] sm:$0xff]
    %v45 = vld [vmem:[#allocation2 + $0xb0] sm:$0xff]
    %v46 = vld [vmem:[#allocation2 + $0xb8] sm:$0xff]
    %v47 = vld [vmem:[#allocation2 + $0xc0] sm:$0xff]
    %v48 = vld [vmem:[#allocation2 + $0xc8] sm:$0xff]
    %v49 = vld [vmem:[#allocation2 + $0xd0] sm:$0xff]
    %v50 = vld [vmem:[#allocation2 + $0xd8] sm:$0xff]
    %v51 = vld [vmem:[#allocation2 + $0xe0] sm:$0xff]
    %v52 = vld [vmem:[#allocation2 + $0xe8] sm:$0xff]
    %v53 = vld [vmem:[#allocation2 + $0xf0] sm:$0xff]
    %v54 = vld [vmem:[#allocation2 + $0xf8] sm:$0xff]
    %v55 = vld [vmem:[#allocation2 + $0x100] sm:$0xff]
    %v56 = vld [vmem:[#allocation2 + $0x108] sm:$0xff]
    %v57 = vld [vmem:[#allocation2 + $0x110] sm:$0xff]
    %v58 = vld [vmem:[#allocation2 + $0x118] sm:$0xff]
    %v59 = vld [vmem:[#allocation2 + $0x120] sm:$0xff]
    %v60 = vld [vmem:[#allocation2 + $0x128] sm:$0xff]
    %v61 = vld [vmem:[#allocation2 + $0x130] sm:$0xff]
    %v62 = vld [vmem:[#allocation2 + $0x138] sm:$0xff]
    %v63 = vld [vmem:[#allocation2 + $0x140] sm:$0xff]
    %v64 = vld [vmem:[#allocation2 + $0x148] sm:$0xff]
    %v65 = vld [vmem:[#allocation2 + $0x150] sm:$0xff]
    %v66 = vld [vmem:[#allocation2 + $0x158] sm:$0xff]
    %v67 = vld [vmem:[#allocation2 + $0x160] sm:$0xff]
    %v68 = vld [vmem:[#allocation2 + $0x168] sm:$0xff]
    %v69 = vld [vmem:[#allocation2 + $0x170] sm:$0xff]
    %v70 = vld [vmem:[#allocation2 + $0x178] sm:$0xff]
    %v71 = vld [vmem:[#allocation2 + $0x180] sm:$0xff]
    %v72 = vld [vmem:[#allocation2 + $0x188] sm:$0xff]
    %v73 = vld [vmem:[#allocation2 + $0x190] sm:$0xff]
    %v74 = vld [vmem:[#allocation2 + $0x198] sm:$0xff]
    %v75 = vld [vmem:[#allocation2 + $0x1a0] sm:$0xff]
    %v76 = vld [vmem:[#allocation2 + $0x1a8] sm:$0xff]
    %v77 = vld [vmem:[#allocation2 + $0x1b0] sm:$0xff]
    %v78 = vld [vmem:[#allocation2 + $0x1b8] sm:$0xff]
    %v79 = vld [vmem:[#allocation2 + $0x1c0] sm:$0xff]
    %v80 = vld [vmem:[#allocation2 + $0x1c8] sm:$0xff]
    %v81 = vld [vmem:[#allocation2 + $0x1d0] sm:$0xff]
    %v82 = vld [vmem:[#allocation2 + $0x1d8] sm:$0xff]
    %v83 = vld [vmem:[#allocation2 + $0x1e0] sm:$0xff]
    %v84 = vld [vmem:[#allocation2 + $0x1e8] sm:$0xff]
    %v85 = vld [vmem:[#allocation2 + $0x1f0] sm:$0xff]
    %v86 = vld [vmem:[#allocation2 + $0x1f8] sm:$0xff]
    %v87 = vld [vmem:[#allocation2 + $0x200] sm:$0xff]
    %v88 = vld [vmem:[#allocation2 + $0x208] sm:$0xff]
    %v89 = vld [vmem:[#allocation2 + $0x210] sm:$0xff]
    %v90 = vld [vmem:[#allocation2 + $0x218] sm:$0xff]
    %v91 = vld [vmem:[#allocation2 + $0x220] sm:$0xff]
    %v92 = vld [vmem:[#allocation2 + $0x228] sm:$0xff]
    %v93 = vld [vmem:[#allocation2 + $0x230] sm:$0xff]
    %v94 = vld [vmem:[#allocation2 + $0x238] sm:$0xff]
    %v95 = vmul.f32 %v23, 0.041666668
    %v96 = vmul.f32 %v24, 0.041666668
    %v97 = vmul.f32 %v25, 0.041666668
    %v98 = vmul.f32 %v26, 0.041666668
    %v99 = vmul.f32 %v27, 0.041666668
    %v100 = vmul.f32 %v28, 0.041666668
    %v101 = vmul.f32 %v29, 0.041666668
    %v102 = vmul.f32 %v30, 0.041666668
    %v103 = vmul.f32 %v31, 0.041666668
    %v104 = vmul.f32 %v32, 0.041666668
    %v105 = vmul.f32 %v33, 0.041666668
    %v106 = vmul.f32 %v34, 0.041666668
    %v107 = vmul.f32 %v35, 0.041666668
    %v108 = vmul.f32 %v36, 0.041666668
    %v109 = vmul.f32 %v37, 0.041666668
    %v110 = vmul.f32 %v38, 0.041666668
    %v111 = vmul.f32 %v39, 0.041666668
    %v112 = vmul.f32 %v40, 0.041666668
    %v113 = vmul.f32 %v41, 0.041666668
    %v114 = vmul.f32 %v42, 0.041666668
    %v115 = vmul.f32 %v43, 0.041666668
    %v116 = vmul.f32 %v44, 0.041666668
    %v117 = vmul.f32 %v45, 0.041666668
    %v118 = vmul.f32 %v46, 0.041666668
    %v119 = vmul.f32 %v47, 0.041666668
    %v120 = vmul.f32 %v48, 0.041666668
    %v121 = vmul.f32 %v49, 0.041666668
    %v122 = vmul.f32 %v50, 0.041666668
    %v123 = vmul.f32 %v51, 0.041666668
    %v124 = vmul.f32 %v52, 0.041666668
    %v125 = vmul.f32 %v53, 0.041666668
    %v126 = vmul.f32 %v54, 0.041666668
    %v127 = vmul.f32 %v55, 0.041666668
    %v128 = vmul.f32 %v56, 0.041666668
    %v129 = vmul.f32 %v57, 0.041666668
    %v130 = vmul.f32 %v58, 0.041666668
    %v131 = vmul.f32 %v59, 0.041666668
    %v132 = vmul.f32 %v60, 0.041666668
    %v133 = vmul.f32 %v61, 0.041666668
    %v134 = vmul.f32 %v62, 0.041666668
    %v135 = vmul.f32 %v63, 0.041666668
    %v136 = vmul.f32 %v64, 0.041666668
    %v137 = vmul.f32 %v65, 0.041666668
    %v138 = vmul.f32 %v66, 0.041666668
    %v139 = vmul.f32 %v67, 0.041666668
    %v140 = vmul.f32 %v68, 0.041666668
    %v141 = vmul.f32 %v69, 0.041666668
    %v142 = vmul.f32 %v70, 0.041666668
    %v143 = vmul.f32 %v71, 0.041666668
    %v144 = vmul.f32 %v72, 0.041666668
    %v145 = vmul.f32 %v73, 0.041666668
    %v146 = vmul.f32 %v74, 0.041666668
    %v147 = vmul.f32 %v75, 0.041666668
    %v148 = vmul.f32 %v76, 0.041666668
    %v149 = vmul.f32 %v77, 0.041666668
    %v150 = vmul.f32 %v78, 0.041666668
    %v151 = vmul.f32 %v79, 0.041666668
    %v152 = vmul.f32 %v80, 0.041666668
    %v153 = vmul.f32 %v81, 0.041666668
    %v154 = vmul.f32 %v82, 0.041666668
    %v155 = vmul.f32 %v83, 0.041666668
    %v156 = vmul.f32 %v84, 0.041666668
    %v157 = vmul.f32 %v85, 0.041666668
    %v158 = vmul.f32 %v86, 0.041666668
    %v159 = vmul.f32 %v87, 0.041666668
    %v160 = vmul.f32 %v88, 0.041666668
    %v161 = vmul.f32 %v89, 0.041666668
    %v162 = vmul.f32 %v90, 0.041666668
    %v163 = vmul.f32 %v91, 0.041666668
    %v164 = vmul.f32 %v92, 0.041666668
    %v165 = vmul.f32 %v93, 0.041666668
    %v166 = vmul.f32 %v94, 0.041666668
    %167 = vst [vmem:[#allocation5] sm:$0xff] %v95
    %168 = vst [vmem:[#allocation5 + $0x8] sm:$0xff] %v96
    %169 = vst [vmem:[#allocation5 + $0x10] sm:$0xff] %v97
    %170 = vst [vmem:[#allocation5 + $0x18] sm:$0xff] %v98
    %171 = vst [vmem:[#allocation5 + $0x20] sm:$0xff] %v99
    %172 = vst [vmem:[#allocation5 + $0x28] sm:$0xff] %v100
    %173 = vst [vmem:[#allocation5 + $0x30] sm:$0xff] %v101
    %174 = vst [vmem:[#allocation5 + $0x38] sm:$0xff] %v102
    %175 = vst [vmem:[#allocation5 + $0x40] sm:$0xff] %v103
    %176 = vst [vmem:[#allocation5 + $0x48] sm:$0xff] %v104
    %177 = vst [vmem:[#allocation5 + $0x50] sm:$0xff] %v105
    %178 = vst [vmem:[#allocation5 + $0x58] sm:$0xff] %v106
    %179 = vst [vmem:[#allocation5 + $0x60] sm:$0xff] %v107
    %180 = vst [vmem:[#allocation5 + $0x68] sm:$0xff] %v108
    %181 = vst [vmem:[#allocation5 + $0x70] sm:$0xff] %v109
    %182 = vst [vmem:[#allocation5 + $0x78] sm:$0xff] %v110
    %183 = vst [vmem:[#allocation5 + $0x80] sm:$0xff] %v111
    %184 = vst [vmem:[#allocation5 + $0x88] sm:$0xff] %v112
    %185 = vst [vmem:[#allocation5 + $0x90] sm:$0xff] %v113
    %186 = vst [vmem:[#allocation5 + $0x98] sm:$0xff] %v114
    %187 = vst [vmem:[#allocation5 + $0xa0] sm:$0xff] %v115
    %188 = vst [vmem:[#allocation5 + $0xa8] sm:$0xff] %v116
    %189 = vst [vmem:[#allocation5 + $0xb0] sm:$0xff] %v117
    %190 = vst [vmem:[#allocation5 + $0xb8] sm:$0xff] %v118
    %191 = vst [vmem:[#allocation5 + $0xc0] sm:$0xff] %v119
    %192 = vst [vmem:[#allocation5 + $0xc8] sm:$0xff] %v120
    %193 = vst [vmem:[#allocation5 + $0xd0] sm:$0xff] %v121
    %194 = vst [vmem:[#allocation5 + $0xd8] sm:$0xff] %v122
    %195 = vst [vmem:[#allocation5 + $0xe0] sm:$0xff] %v123
    %196 = vst [vmem:[#allocation5 + $0xe8] sm:$0xff] %v124
    %197 = vst [vmem:[#allocation5 + $0xf0] sm:$0xff] %v125
    %198 = vst [vmem:[#allocation5 + $0xf8] sm:$0xff] %v126
    %199 = vst [vmem:[#allocation5 + $0x100] sm:$0xff] %v127
    %200 = vst [vmem:[#allocation5 + $0x108] sm:$0xff] %v128
    %201 = vst [vmem:[#allocation5 + $0x110] sm:$0xff] %v129
    %202 = vst [vmem:[#allocation5 + $0x118] sm:$0xff] %v130
    %203 = vst [vmem:[#allocation5 + $0x120] sm:$0xff] %v131
    %204 = vst [vmem:[#allocation5 + $0x128] sm:$0xff] %v132
    %205 = vst [vmem:[#allocation5 + $0x130] sm:$0xff] %v133
    %206 = vst [vmem:[#allocation5 + $0x138] sm:$0xff] %v134
    %207 = vst [vmem:[#allocation5 + $0x140] sm:$0xff] %v135
    %208 = vst [vmem:[#allocation5 + $0x148] sm:$0xff] %v136
    %209 = vst [vmem:[#allocation5 + $0x150] sm:$0xff] %v137
    %210 = vst [vmem:[#allocation5 + $0x158] sm:$0xff] %v138
    %211 = vst [vmem:[#allocation5 + $0x160] sm:$0xff] %v139
    %212 = vst [vmem:[#allocation5 + $0x168] sm:$0xff] %v140
    %213 = vst [vmem:[#allocation5 + $0x170] sm:$0xff] %v141
    %214 = vst [vmem:[#allocation5 + $0x178] sm:$0xff] %v142
    %215 = vst [vmem:[#allocation5 + $0x180] sm:$0xff] %v143
    %216 = vst [vmem:[#allocation5 + $0x188] sm:$0xff] %v144
    %217 = vst [vmem:[#allocation5 + $0x190] sm:$0xff] %v145
    %218 = vst [vmem:[#allocation5 + $0x198] sm:$0xff] %v146
    %219 = vst [vmem:[#allocation5 + $0x1a0] sm:$0xff] %v147
    %220 = vst [vmem:[#allocation5 + $0x1a8] sm:$0xff] %v148
    %221 = vst [vmem:[#allocation5 + $0x1b0] sm:$0xff] %v149
    %222 = vst [vmem:[#allocation5 + $0x1b8] sm:$0xff] %v150
    %223 = vst [vmem:[#allocation5 + $0x1c0] sm:$0xff] %v151
    %224 = vst [vmem:[#allocation5 + $0x1c8] sm:$0xff] %v152
    %225 = vst [vmem:[#allocation5 + $0x1d0] sm:$0xff] %v153
    %226 = vst [vmem:[#allocation5 + $0x1d8] sm:$0xff] %v154
    %227 = vst [vmem:[#allocation5 + $0x1e0] sm:$0xff] %v155
    %228 = vst [vmem:[#allocation5 + $0x1e8] sm:$0xff] %v156
    %229 = vst [vmem:[#allocation5 + $0x1f0] sm:$0xff] %v157
    %230 = vst [vmem:[#allocation5 + $0x1f8] sm:$0xff] %v158
    %231 = vst [vmem:[#allocation5 + $0x200] sm:$0xff] %v159
    %232 = vst [vmem:[#allocation5 + $0x208] sm:$0xff] %v160
    %233 = vst [vmem:[#allocation5 + $0x210] sm:$0xff] %v161
    %234 = vst [vmem:[#allocation5 + $0x218] sm:$0xff] %v162
    %235 = vst [vmem:[#allocation5 + $0x220] sm:$0xff] %v163
    %236 = vst [vmem:[#allocation5 + $0x228] sm:$0xff] %v164
    %237 = vst [vmem:[#allocation5 + $0x230] sm:$0xff] %v165
    %238 = vst [vmem:[#allocation5 + $0x238] sm:$0xff] %v166
    // Predicated region
    $region10: #{tpu_custom_call.1} parent=1 // pred_check
      _
    $region11: #{tpu_custom_call.1} parent=1 // pred_check_branch
      %240 = sbr.rel (0) target = $region13
    $region12: #{tpu_custom_call.1} parent=1 // pred_region
      %s242 = ssub.s32 9216, 9216
      %243 = vsyncadd [#allocation4], %s242
      %s244 = sshll.u32 [#allocation5], 4
      %s245 = int_to_ptr.vmem [resolvable:$true] %s244
      %250 = dma.vmem_to_hbm [thread:$0]  %s245, 9216, %s1, [#allocation4], 1024, 1024, 64
    $region13: #{tpu_custom_call.1} parent=1 // pred_fallthru
      _
    // Predicated region
    $region14: #{tpu_custom_call.1} parent=1 // pred_check
      _
    $region15: #{tpu_custom_call.1} parent=1 // pred_check_branch
      %252 = sbr.rel (0) target = $region17
    $region16: #{tpu_custom_call.1} parent=1 // pred_region
      %253 = dma.done [#allocation4], 9216
    $region17: #{tpu_custom_call.1} parent=1 // pred_fallthru
      _
    %254 = vsyncpa [#allocation3], 1
    %255 = vsyncpa [#allocation4], 1

</llo_original>
